<compile_context>
chip_gen: v7x
topology: tpu7x:2x2x1
jax: 0.10.0
libtpu: 0.0.40
codegen_flags: <defaults>
</compile_context>

<pallas_src>
import functools

import jax
import jax.numpy as jnp
from jax.experimental import pallas as pl
from jax.experimental.pallas import tpu as pltpu


def _vmem_budget():
    """(per-step tile budget, vmem_limit_bytes) chosen per TPU generation."""
    kind = ""
    try:
        kind = jax.devices()[0].device_kind.lower()
    except Exception:  # pragma: no cover - defensive; fall through to v7x-safe
        pass
    # v5e / v6e have 128 MiB VMEM per TensorCore -> larger tiles amortize the
    # ~0.35 us per-grid-step overhead.  v7x (64 MiB) / unknown stays tight.
    if ("v5" in kind) or ("v6" in kind):
        return 48 * 1024 * 1024, 96 * 1024 * 1024
    return 20 * 1024 * 1024, 48 * 1024 * 1024


def _choose_tiles(B, S, H, itemsize, n_hidden, budget):
    """Pick (TB, TS, TH) satisfying Mosaic layout rules and the VMEM budget.

    Layout rules used:
      * TB is the sublane dim of the 2-D mask / inv / output blocks -> must be
        a multiple of 8 or equal B,
      * TS is the lane dim of the mask block and sublane dim of the hidden
        blocks -> multiple of 128 (>=8 sublanes too) or equal S,
      * TH is the lane dim of the hidden / output blocks -> multiple of 128 or
        equal H.
    """
    def cands(dim, extra):
        c = {dim}
        for t in extra:
            if dim % t == 0:
                c.add(t)
        return sorted(c, reverse=True)

    tb_all = cands(B, (64, 32, 16, 8))
    ts_all = cands(S, (4096, 2048, 1024, 512, 256, 128))
    th_all = cands(H, (4096, 2048, 1024, 512, 256, 128))

    def fits(tb, ts, th):
        per_step = n_hidden * 2 * tb * ts * th * itemsize   # hidden, 2 bufs
        per_step += 2 * tb * ts * th * 4                    # f32 upcast/product
        per_step += 2 * tb * ts * 4                         # mask, 2 bufs
        per_step += 2 * tb * 4                              # 1/count
        per_step += tb * th * (itemsize + 4)                # out + f32 acc
        return per_step <= budget

    # Pass 1: require >= 2 parallel batch iterations (so v7x can shard the
    # grid across its two TensorCores).  Pass 2: any legal TB.
    passes = []
    tb_par = [t for t in tb_all if B // t >= 2]
    if tb_par:
        passes.append(tb_par)
    passes.append(tb_all)

    for tb_cands in passes:
        best = None
        for tb in tb_cands:
            for th in th_all:
                for ts in ts_all:
                    if fits(tb, ts, th):
                        key = (tb * ts * th, ts, th)
                        if best is None or key > best[0]:
                            best = (key, (tb, ts, th))
        if best is not None:
            return best[1]
    # Nothing fits the budget: best effort with the smallest legal tiles.
    return tb_all[-1], ts_all[-1], th_all[-1]


def _make_pool_kernel(n_hidden, low_precision):
    """Masked-sum kernel over one (TB, TS, TH) tile, accumulated over S tiles.

    refs: mask (TB, TS) f32, inv (TB, 1) f32, h_0..h_{n-1} (TB, TS, TH),
          out (TB, TH), acc scratch (TB, TH) f32.
    The 1/n_hidden layer-average scale is folded into `inv` by the wrapper.
    """

    def kernel(mask_ref, inv_ref, *rest):
        h_refs = rest[:n_hidden]
        out_ref = rest[n_hidden]
        acc_ref = rest[n_hidden + 1]
        s_idx = pl.program_id(2)

        @pl.when(s_idx == 0)
        def _init():
            acc_ref[...] = jnp.zeros_like(acc_ref)

        if low_precision:
            # bf16/fp16 inputs: add + mask multiply in the narrow dtype (mask
            # is 0/1 so the multiply is exact); cast to f32 once for the sum.
            h = h_refs[0][...]
            for r in h_refs[1:]:
                h = h + r[...]
            m = mask_ref[...].astype(h.dtype)                 # (TB, TS)
            p = h * m[:, :, None]                             # (TB, TS, TH)
            acc_ref[...] += jnp.sum(p.astype(jnp.float32), axis=1)
        else:
            # f32 inputs: compute entirely in f32 (also the v5e-safe path).
            h = h_refs[0][...].astype(jnp.float32)
            for r in h_refs[1:]:
                h = h + r[...].astype(jnp.float32)
            m = mask_ref[...]                                  # (TB, TS) f32
            acc_ref[...] += jnp.sum(h * m[:, :, None], axis=1)

        @pl.when(s_idx == pl.num_programs(2) - 1)
        def _finalize():
            # inv already carries 1/mask_count * 1/n_hidden -> one VPU multiply.
            out_ref[...] = (acc_ref[...] * inv_ref[...]).astype(out_ref.dtype)

    return kernel


@jax.jit
def _masked_mean_pool(attention_mask, hiddens):
    """Masked mean over seq of the elementwise average of `hiddens` ([B,S,H])."""
    hiddens = tuple(hiddens)
    n = len(hiddens)
    h0 = hiddens[0]
    B, S, H = h0.shape
    out_dtype = h0.dtype
    itemsize = jnp.dtype(out_dtype).itemsize

    mask_f = attention_mask.astype(jnp.float32)                     # (B, S)
    # Unguarded like the reference: an all-zero mask row yields inf/nan.
    # 1/n layer-average scale folded in (exact for n in {1, 2}).
    inv = (1.0 / float(n)) / jnp.sum(mask_f, axis=-1, keepdims=True)  # (B,1) f32

    budget, vmem_limit = _vmem_budget()
    TB, TS, TH = _choose_tiles(B, S, H, itemsize, n, budget)
    grid = (B // TB, H // TH, S // TS)

    low_precision = jnp.dtype(out_dtype) in (
        jnp.dtype(jnp.bfloat16), jnp.dtype(jnp.float16))

    hid_spec = pl.BlockSpec((TB, TS, TH), lambda b, h, s: (b, s, h))
    in_specs = [
        pl.BlockSpec((TB, TS), lambda b, h, s: (b, s)),   # mask (lane-dense S)
        pl.BlockSpec((TB, 1), lambda b, h, s: (b, 0)),    # scale / mask count
    ] + [hid_spec] * n

    out = pl.pallas_call(
        _make_pool_kernel(n, low_precision),
        out_shape=jax.ShapeDtypeStruct((B, H), out_dtype),
        grid_spec=pltpu.PrefetchScalarGridSpec(
            num_scalar_prefetch=0,
            grid=grid,
            in_specs=in_specs,
            out_specs=pl.BlockSpec((TB, TH), lambda b, h, s: (b, h)),
            scratch_shapes=[pltpu.VMEM((TB, TH), jnp.float32)],
        ),
        compiler_params=pltpu.CompilerParams(
            # batch / hidden axes parallel (megacore sharding on v7x);
            # sequence axis is the reduction -> arbitrary, last.
            dimension_semantics=("parallel", "parallel", "arbitrary"),
            vmem_limit_bytes=vmem_limit,
        ),
    )(mask_f, inv, *hiddens)
    return out


class CustomizedPooler:
    """JAX/Pallas port of the parameter-free CustomizedPooler."""

    def __init__(self, pooler_type: str):
        assert pooler_type in [
            "cls", "cls_before_pooler", "avg", "avg_top2", "avg_first_last"
        ], "unrecognized pooling type %s" % pooler_type
        self.pooler_type = pooler_type

    def __call__(self, attention_mask, outputs):
        last_hidden = outputs["last_hidden_state"]     # [B, S, H]
        pooler_output = outputs["pooler_output"]       # [B, H]
        hidden_states = outputs["hidden_states"]       # tuple of [B, S, H]

        if self.pooler_type == "cls_before_pooler":
            return last_hidden[:, 0]                   # plain-JAX glue (indexing)
        if self.pooler_type == "cls":
            return pooler_output                       # plain-JAX glue (pass-through)
        elif self.pooler_type == "avg":
            # Single-input kernel: last_hidden read from HBM exactly once.
            return _masked_mean_pool(attention_mask, (last_hidden,))
        elif self.pooler_type == "avg_first_last":
            return _masked_mean_pool(
                attention_mask, (hidden_states[0], hidden_states[-1]))
        elif self.pooler_type == "avg_top2":
            return _masked_mean_pool(
                attention_mask, (hidden_states[-1], hidden_states[-2]))
        else:
            raise NotImplementedError


def _reference_pool(pooler_type, attention_mask, outputs):
    """Pure-JAX reference matching the PyTorch semantics (f32 math)."""
    last_hidden = outputs["last_hidden_state"].astype(jnp.float32)
    pooler_output = outputs["pooler_output"]
    hidden_states = [h.astype(jnp.float32) for h in outputs["hidden_states"]]
    m = attention_mask.astype(jnp.float32)
    if pooler_type == "cls_before_pooler":
        return outputs["last_hidden_state"][:, 0]
    if pooler_type == "cls":
        return pooler_output
    if pooler_type == "avg":
        return (last_hidden * m[..., None]).sum(1) / m.sum(-1)[..., None]
    if pooler_type == "avg_first_last":
        h = (hidden_states[0] + hidden_states[-1]) / 2.0
        return (h * m[..., None]).sum(1) / m.sum(-1)[..., None]
    if pooler_type == "avg_top2":
        h = (hidden_states[-1] + hidden_states[-2]) / 2.0
        return (h * m[..., None]).sum(1) / m.sum(-1)[..., None]
    raise NotImplementedError


if __name__ == "__main__":
    key = jax.random.PRNGKey(0)
    B, S, H = 2, 8, 32
    n_layers = 3  # hidden_states: embeddings output + 2 layers

    keys = jax.random.split(key, n_layers + 1)
    hidden_states = tuple(
        jax.random.normal(keys[i], (B, S, H), dtype=jnp.float32)
        for i in range(n_layers)
    )
    last_hidden_state = hidden_states[-1]
    pooler_output = jnp.tanh(
        jax.random.normal(keys[n_layers], (B, H), dtype=jnp.float32)
    )
    # Attention mask with some padding (int32, like HF attention_mask).
    attention_mask = jnp.array(
        [[1] * 6 + [0] * 2, [1] * 4 + [0] * 4], dtype=jnp.int32
    )
    assert attention_mask.shape == (B, S)

    outputs = {
        "last_hidden_state": last_hidden_state,
        "pooler_output": pooler_output,
        "hidden_states": hidden_states,
    }

    ok = True
    # f32 path (all pooler types).
    for pooler_type in ["cls", "cls_before_pooler", "avg",
                        "avg_top2", "avg_first_last"]:
        pooler = CustomizedPooler(pooler_type)
        got = jax.block_until_ready(pooler(attention_mask, outputs))
        want = _reference_pool(pooler_type, attention_mask, outputs)
        assert got.shape == (B, H), (pooler_type, got.shape)
        if not jnp.allclose(got.astype(jnp.float32),
                            want.astype(jnp.float32), atol=1e-5, rtol=1e-5):
            ok = False
            print(f"MISMATCH in {pooler_type}")

    # bf16 path (exercises the low-precision add/mask-mul + f32 accumulation).
    outputs_bf16 = {
        "last_hidden_state": last_hidden_state.astype(jnp.bfloat16),
        "pooler_output": pooler_output.astype(jnp.bfloat16),
        "hidden_states": tuple(h.astype(jnp.bfloat16) for h in hidden_states),
    }
    for pooler_type in ["avg", "avg_top2", "avg_first_last"]:
        pooler = CustomizedPooler(pooler_type)
        got = jax.block_until_ready(pooler(attention_mask, outputs_bf16))
        want = _reference_pool(pooler_type, attention_mask, outputs_bf16)
        assert got.shape == (B, H), (pooler_type, got.shape)
        if not jnp.allclose(got.astype(jnp.float32),
                            want.astype(jnp.float32), atol=8e-2, rtol=5e-2):
            ok = False
            print(f"MISMATCH in bf16 {pooler_type}")

    if ok:
        print("KERNEL_OK")
</pallas_src>

<mosaic_0001>
module attributes {stable_mosaic.version = 11 : i64} {
  func.func @kernel(%arg0: i32, %arg1: i32, %arg2: i32, %arg3: memref<2x8xf32, #tpu.memory_space<vmem>>, %arg4: memref<2x1xf32, #tpu.memory_space<vmem>>, %arg5: memref<2x8x32xf32, #tpu.memory_space<vmem>>, %arg6: memref<2x32xf32, #tpu.memory_space<vmem>>, %arg7: memref<2x32xf32, #tpu.memory_space<vmem>>) attributes {dimension_semantics = [#tpu.dimension_semantics<parallel>, #tpu.dimension_semantics<parallel>, #tpu.dimension_semantics<arbitrary>], iteration_bounds = array<i64: 1, 1, 1>, scalar_prefetch = 0 : i64, scratch_operands = 1 : i64, tpu.core_type = #tpu.core_type<tc>, window_params = [{transform_indices = @transform_0, window_bounds = array<i64: 2, 8>}, {transform_indices = @transform_1, window_bounds = array<i64: 2, 1>}, {transform_indices = @transform_2, window_bounds = array<i64: 2, 8, 32>}, {transform_indices = @transform_3, window_bounds = array<i64: 2, 32>}]} {
    %c0_i32 = arith.constant 0 : i32
    %0 = arith.cmpi eq, %arg2, %c0_i32 : i32
    %1 = arith.extui %0 : i1 to i32
    %c0_i32_0 = arith.constant 0 : i32
    %2 = arith.cmpi ne, %1, %c0_i32_0 : i32
    scf.if %2 {
      %cst_11 = arith.constant 0.000000e+00 : f32
      %15 = vector.broadcast %cst_11 : f32 to vector<2x32xf32>
      %c0_12 = arith.constant 0 : index
      %c0_13 = arith.constant 0 : index
      %16 = vector.load %arg7[%c0_12, %c0_13] : memref<2x32xf32, #tpu.memory_space<vmem>>, vector<2x32xf32>
      tpu.vector_store %arg7[%c0_12, %c0_13], %15 {strides = array<i32>} : memref<2x32xf32, #tpu.memory_space<vmem>>, vector<2x32xf32>,
    } else {
    }
    %c0 = arith.constant 0 : index
    %c0_1 = arith.constant 0 : index
    %c0_2 = arith.constant 0 : index
    %3 = vector.load %arg5[%c0, %c0_1, %c0_2] : memref<2x8x32xf32, #tpu.memory_space<vmem>>, vector<2x8x32xf32>
    %c0_3 = arith.constant 0 : index
    %c0_4 = arith.constant 0 : index
    %4 = vector.load %arg3[%c0_3, %c0_4] : memref<2x8xf32, #tpu.memory_space<vmem>>, vector<2x8xf32>
    %c0_5 = arith.constant 0 : index
    %c0_6 = arith.constant 0 : index
    %5 = vector.load %arg7[%c0_5, %c0_6] : memref<2x32xf32, #tpu.memory_space<vmem>>, vector<2x32xf32>
    %6 = vector.shape_cast %4 : vector<2x8xf32> to vector<2x8x1xf32>
    %7 = vector.broadcast %6 : vector<2x8x1xf32> to vector<2x8x32xf32>
    %8 = arith.mulf %3, %7 : vector<2x8x32xf32>
    %cst = arith.constant dense<0.000000e+00> : vector<2x32xf32>
    %9 = vector.multi_reduction <add>, %8, %cst [1] : vector<2x8x32xf32> to vector<2x32xf32>
    %10 = arith.addf %5, %9 : vector<2x32xf32>
    %c0_7 = arith.constant 0 : index
    %c0_8 = arith.constant 0 : index
    %11 = vector.load %arg7[%c0_7, %c0_8] : memref<2x32xf32, #tpu.memory_space<vmem>>, vector<2x32xf32>
    tpu.vector_store %arg7[%c0_7, %c0_8], %10 {strides = array<i32>} : memref<2x32xf32, #tpu.memory_space<vmem>>, vector<2x32xf32>,
    %c0_i32_9 = arith.constant 0 : i32
    %12 = arith.cmpi eq, %arg2, %c0_i32_9 : i32
    %13 = arith.extui %12 : i1 to i32
    %c0_i32_10 = arith.constant 0 : i32
    %14 = arith.cmpi ne, %13, %c0_i32_10 : i32
    scf.if %14 {
      %c0_11 = arith.constant 0 : index
      %c0_12 = arith.constant 0 : index
      %15 = vector.load %arg7[%c0_11, %c0_12] : memref<2x32xf32, #tpu.memory_space<vmem>>, vector<2x32xf32>
      %c0_13 = arith.constant 0 : index
      %c0_14 = arith.constant 0 : index
      %16 = vector.load %arg4[%c0_13, %c0_14] : memref<2x1xf32, #tpu.memory_space<vmem>>, vector<2x1xf32>
      %17 = vector.broadcast %16 : vector<2x1xf32> to vector<2x32xf32>
      %18 = arith.mulf %15, %17 : vector<2x32xf32>
      %c0_15 = arith.constant 0 : index
      %c0_16 = arith.constant 0 : index
      %19 = vector.load %arg6[%c0_15, %c0_16] : memref<2x32xf32, #tpu.memory_space<vmem>>, vector<2x32xf32>
      tpu.vector_store %arg6[%c0_15, %c0_16], %18 {strides = array<i32>} : memref<2x32xf32, #tpu.memory_space<vmem>>, vector<2x32xf32>,
    } else {
    }
    return
  }
  func.func @transform_0(%arg0: i32, %arg1: i32, %arg2: i32) -> (i32, i32) {
    %c0_i32 = arith.constant 0 : i32
    return %arg0, %arg2 : i32, i32
  }
  func.func @transform_1(%arg0: i32, %arg1: i32, %arg2: i32) -> (i32, i32) {
    %c0_i32 = arith.constant 0 : i32
    %c0_i32_0 = arith.constant 0 : i32
    return %arg0, %c0_i32 : i32, i32
  }
  func.func @transform_2(%arg0: i32, %arg1: i32, %arg2: i32) -> (i32, i32, i32) {
    %c0_i32 = arith.constant 0 : i32
    return %arg0, %arg2, %arg1 : i32, i32, i32
  }
  func.func @transform_3(%arg0: i32, %arg1: i32, %arg2: i32) -> (i32, i32) {
    %c0_i32 = arith.constant 0 : i32
    return %arg0, %arg1 : i32, i32
  }
}

</mosaic_0001>

<llo_original>
// kernel: _masked_mean_pool.1
$region0: #{_masked_mean_pool.1}
  #allocation0 [shape = 'u32[]', space=smem, size = 0x4, offset = 0x4, fixed_abs, tag = 'smem constant byte address 0x4 - core index']
  #allocation1 [shape = 'u32[144,128]{1,0:T(1,128)}', space=vmem, size = 0x12000, scoped, tag = 'internal scratch']
  #allocation2 [shape = 'f32[2,32]{1,0:T(2,128)}', space=vmem, size = 0x400, scoped, tag = 'scratch operand']
  %s0 = inlined_call_operand.vmem [shape: f32[2,8], index: 0, kind: input, shape index: {}]
  %s1 = inlined_call_operand.vmem [shape: f32[2,1], index: 1, kind: input, shape index: {}]
  %s2 = inlined_call_operand.hbm [shape: f32[2,8,32], index: 2, kind: input, shape index: {}]
  %s3 = inlined_call_operand.hbm [shape: f32[2,32], index: 3, kind: output, shape index: {}]
  %s4 = sld [smem:[#allocation0]]
  $region34: #{_masked_mean_pool.1} parent=0
    _
  %s6 = ssub.s32 1, %s4
  %s7 = scalar_select 0, %s6, %s4
  $region1: #{_masked_mean_pool.1} parent=0
    #allocation3 [shape = 'u8[8192]{0}', space=vmem, size = 0x2000, scoped, tag = 'input window, operand 2, single buffered']
    #allocation4 [shape = 's32[1]{0}', space=sflag, size = 0x4, scoped, tag = 'scoped memory for _masked_mean_pool.1']
    #allocation5 [shape = 's32[1]{0}', space=sflag, size = 0x4, scoped, tag = 'scoped memory for _masked_mean_pool.1']
    #allocation6 [shape = 'u8[1024]{0}', space=vmem, size = 0x400, scoped, tag = 'output window, operand 0, single buffered']
    %8 = vsyncpa [#allocation4], 0
    %9 = vsyncpa [#allocation5], 0
    // Predicated region
    $region2: #{_masked_mean_pool.1} parent=1 // pred_check
      _
    $region3: #{_masked_mean_pool.1} parent=1 // pred_check_branch
      %11 = sbr.rel (0) target = $region5
    $region4: #{_masked_mean_pool.1} parent=1 // pred_region
      _
    $region5: #{_masked_mean_pool.1} parent=1 // pred_fallthru
      _
    // Predicated region
    $region6: #{_masked_mean_pool.1} parent=1 // pred_check
      _
    $region7: #{_masked_mean_pool.1} parent=1 // pred_check_branch
      %13 = sbr.rel (0) target = $region9
    $region8: #{_masked_mean_pool.1} parent=1 // pred_region
      _
    $region9: #{_masked_mean_pool.1} parent=1 // pred_fallthru
      _
    // Predicated region
    $region10: #{_masked_mean_pool.1} parent=1 // pred_check
      _
    $region11: #{_masked_mean_pool.1} parent=1 // pred_check_branch
      %15 = sbr.rel (0) target = $region13
    $region12: #{_masked_mean_pool.1} parent=1 // pred_region
      %s17 = ssub.s32 256, 256
      %18 = vsyncadd [#allocation4], %s17
      %s19 = sshll.u32 [#allocation3], 4
      %s20 = int_to_ptr.vmem [resolvable:$true] %s19
      %25 = dma.hbm_to_vmem [thread:$0]  %s2, 256, %s20, [#allocation4], 128, 128, 8
    $region13: #{_masked_mean_pool.1} parent=1 // pred_fallthru
      _
    // Predicated region
    $region14: #{_masked_mean_pool.1} parent=1 // pred_check
      _
    $region15: #{_masked_mean_pool.1} parent=1 // pred_check_branch
      %27 = sbr.rel (0) target = $region17
    $region16: #{_masked_mean_pool.1} parent=1 // pred_region
      %28 = dma.done [#allocation4], 256
    $region17: #{_masked_mean_pool.1} parent=1 // pred_fallthru
      _
    %p29 = scmp.eq.s32.totalorder 0, 0
    // Predicated region
    $region18: #{_masked_mean_pool.1} parent=1 // pred_check
      %p30 = pneg %p29
    $region19: #{_masked_mean_pool.1} parent=1 // pred_check_branch
      %32 = sbr.rel (%p30) target = $region21
    $region20: #{_masked_mean_pool.1} parent=1 // pred_region
      %vm33 = vcmask 254976
      %34 = vst.msk [vmem:[#allocation2] sm:$0x3] %vm33, 0.0
    $region21: #{_masked_mean_pool.1} parent=1 // pred_fallthru
      _
    %v35 = vld [vmem:[#allocation3] sm:$0xff]
    %v36 = vld [vmem:[#allocation3 + $0x8] sm:$0xff]
    %v37 = vld [vmem:[%s0] sm:$0x3]
    %v38 = vld [vmem:[#allocation2] sm:$0x3]
    %v39 = vlaneseq
    %v40 = vshrl.u32 %v39, 7
    %v41 = vsub.s32 0, %v40
    %v42 = vrot.slane %v37, %v41
    %44 = vbcast.lane.b32.xlu0 %v42, 256
    %v45 = vpop.permute.xlu0 %44
    %v46 = vlaneseq
    %v47 = vshrl.u32 %v46, 7
    %v48 = vsub.s32 1, %v47
    %v49 = vrot.slane %v37, %v48
    %51 = vbcast.lane.b32.xlu0 %v49, 256
    %v52 = vpop.permute.xlu0 %51
    %v53 = vmul.f32 %v35, %v45
    %v54 = vmul.f32 %v36, %v52
    %vm55 = vcmask 261120
    %v56 = vsel %vm55, %v53, 0.0
    %v57 = vrot.slane %v56, 4
    %v58 = vadd.f32 %v56, %v57
    %v59 = vrot.slane %v58, 2
    %v60 = vadd.f32 %v58, %v59
    %v61 = vrot.slane %v60, 1
    %v62 = vadd.f32 %v60, %v61
    %v63 = vsel %vm55, %v54, 0.0
    %v64 = vrot.slane %v63, 4
    %v65 = vadd.f32 %v63, %v64
    %v66 = vrot.slane %v65, 2
    %v67 = vadd.f32 %v65, %v66
    %v68 = vrot.slane %v67, 1
    %v69 = vadd.f32 %v67, %v68
    %vm72 = vcmask 1041409
    %v73 = vsel %vm72, %v69, %v62
    %v75 = vadd.f32 %v38, %v73
    %vm76 = vcmask 254976
    %77 = vst.msk [vmem:[#allocation2] sm:$0x3] %vm76, %v75
    // Predicated region
    $region22: #{_masked_mean_pool.1} parent=1 // pred_check
      %p78 = pneg %p29
    $region23: #{_masked_mean_pool.1} parent=1 // pred_check_branch
      %80 = sbr.rel (%p78) target = $region25
    $region24: #{_masked_mean_pool.1} parent=1 // pred_region
      %v81 = vld [vmem:[#allocation2] sm:$0x3]
      %v82 = vld [vmem:[%s1] sm:$0x3]
      %84 = vset.pattern.permute.xlu0 0
      %85 = vperm.xlu0 %84, %v82
      %v86 = vpop.permute.xlu0 %85
      %v88 = vmul.f32 %v81, %v86
      %89 = vst.msk [vmem:[#allocation6] sm:$0x3] %vm76, %v88
    $region25: #{_masked_mean_pool.1} parent=1 // pred_fallthru
      _
    // Predicated region
    $region26: #{_masked_mean_pool.1} parent=1 // pred_check
      _
    $region27: #{_masked_mean_pool.1} parent=1 // pred_check_branch
      %91 = sbr.rel (0) target = $region29
    $region28: #{_masked_mean_pool.1} parent=1 // pred_region
      %s93 = ssub.s32 32, 32
      %94 = vsyncadd [#allocation5], %s93
      %s96 = sshll.u32 [#allocation6], 4
      %s97 = int_to_ptr.vmem [resolvable:$true] %s96
      %99 = dma.vmem_to_hbm [thread:$0]  %s97, 32, %s3, [#allocation5]
    $region29: #{_masked_mean_pool.1} parent=1 // pred_fallthru
      _
    // Predicated region
    $region30: #{_masked_mean_pool.1} parent=1 // pred_check
      _
    $region31: #{_masked_mean_pool.1} parent=1 // pred_check_branch
      %101 = sbr.rel (0) target = $region33
    $region32: #{_masked_mean_pool.1} parent=1 // pred_region
      %102 = dma.done [#allocation5], 32
    $region33: #{_masked_mean_pool.1} parent=1 // pred_fallthru
      _
    %103 = vsyncpa [#allocation4], 1
    %104 = vsyncpa [#allocation5], 1

</llo_original>
